<compile_context>
chip_gen: v7x
topology: tpu7x:2x2x1
jax: 0.10.0
libtpu: 0.0.40
codegen_flags: <defaults>
</compile_context>

<pallas_src>
import functools

import jax
import jax.numpy as jnp
from jax.experimental import pallas as pl
from jax.experimental.pallas import tpu as pltpu


def _round_up(x, m):
    return ((x + m - 1) // m) * m


def _pick_batch_block(n, target=32, max_block=64):
    """Pick (batch_block, padded_batch).

    Prefers a multiple-of-8 block that divides N exactly (no host-side pad copy
    of x), close to `target` so each grid step does several microseconds of work
    and the grid usually keeps >= 2 steps (both v7x TensorCores busy).
    """
    def best(cands):
        return min(cands, key=lambda c: (abs(c - target), -c))

    cands = [b for b in range(8, min(max_block, n) + 1, 8) if n % b == 0]
    if cands:
        return best(cands), n
    if n <= max_block:                       # one block covering the whole batch
        return n, n
    n_pad = _round_up(n, 8)                  # minimal padding; keep blocks >= 24
    cands = [b for b in range(24, min(max_block, n_pad) + 1, 8) if n_pad % b == 0]
    if cands:
        return best(cands), n_pad
    return target, _round_up(n, target)      # last resort: pad up to `target`


@functools.lru_cache(maxsize=None)
def _roll_signs():
    """Empirically pins down pltpu.roll's rotation direction (sublane and lane)
    with a tiny one-time probe so the conv shift-add is convention-independent."""
    def probe(x_ref, a_ref, b_ref):
        a_ref[...] = pltpu.roll(x_ref[...], 1, axis=0)
        b_ref[...] = pltpu.roll(x_ref[...], 1, axis=1)

    x = (jax.lax.broadcasted_iota(jnp.float32, (8, 128), 0) * 128.0
         + jax.lax.broadcasted_iota(jnp.float32, (8, 128), 1))
    a, b = pl.pallas_call(
        probe,
        out_shape=(jax.ShapeDtypeStruct((8, 128), jnp.float32),
                   jax.ShapeDtypeStruct((8, 128), jnp.float32)),
    )(x)
    row_sign = 1 if float(a[1, 0]) == 0.0 else -1    # np.roll convention -> +1
    col_sign = 1 if float(b[0, 1]) == 0.0 else -1
    return row_sign, col_sign


def _make_cnn_kernel(kernel_sizes, kernel_num, block_b, h_pad, h_orig, stride,
                     c_pad, row_sign, col_sign):
    """Builds the Pallas kernel body (all shape constants are static closures)."""
    kn = kernel_num
    num_k = len(kernel_sizes)
    G = num_k * kn                      # one column group = all kernels x channels
    max_k = max(kernel_sizes)
    M = block_b * h_pad                 # rows per block (multiple of 8)

    def kernel(x_ref, w_ref, b_ref, lim_ref, fcw_ref, fcb_ref, out_ref):
        # One lane-dense MXU matmul covering every kernel size / tap / channel.
        # bf16 x bf16 -> f32 accumulation.
        y = jnp.dot(x_ref[...], w_ref[...],
                    preferred_element_type=jnp.float32)              # (M, c_pad)

        # Conv as roll-add: tap s of kernel j lives in columns
        # [s*G + j*kn, s*G + (j+1)*kn) of y.  Two XLU rolls align tap s to
        # output row t and to column group [0, G); taps a kernel does not have
        # were packed as zero weight columns, so they contribute exactly 0, and
        # wrap-around rows only land on positions masked below.
        acc = y
        for s in range(1, max_k):
            t = pltpu.roll(y, (-row_sign * s) % M, axis=0)           # rows: y[t+s]
            t = pltpu.roll(t, (-col_sign * s * G) % c_pad, axis=1)   # tap s -> [0,G)
            acc = acc + t

        h = jnp.maximum(acc + b_ref[...], 0.0)                       # bias + ReLU

        # Mask invalid conv positions (per kernel size), padded rows, off-stride
        # rows, and the zero-padded lane columns.  Post-ReLU values are >= 0, so
        # replacing invalid entries with 0 keeps the global max exact.
        t_local = jax.lax.broadcasted_iota(jnp.int32, (M, c_pad), 0) % h_pad
        valid = t_local <= lim_ref[...]
        if stride != 1:
            valid = jnp.logical_and(valid, t_local % stride == 0)
        h = jnp.where(valid, h, 0.0)

        # Global max-pool over time for each batch element (Hp % 8 == 0 so the
        # reshape is layout-free), then the final FC as a VPU multiply + lane
        # reduction (12 useful terms -- too small for the MXU).
        feat = jnp.max(h.reshape(block_b, h_pad, c_pad), axis=1)     # (B, c_pad)
        out = jnp.sum(feat * fcw_ref[...], axis=1, keepdims=True) + fcb_ref[0, 0]
        out_ref[...] = out                                           # (B, 1)

    return kernel


def cnn_forward(x, conv_ws, conv_bs, fc_w, fc_b, kernel_sizes, stride,
                block_batch=32, max_block=64, compute_dtype=jnp.bfloat16):
    """x: (N, 1, H, W).  conv_ws[i]: (kernel_num, 1, k_i, W).  fc_w: (len(ks)*kn, 1)."""
    N, C, H, W = x.shape
    assert C == 1
    kn = conv_ws[0].shape[0]
    num_k = len(kernel_sizes)
    max_k = max(kernel_sizes)
    assert H >= max_k

    G = num_k * kn
    c_pad = max(_round_up(max_k * G, 128), 128)     # lane-dense matmul output

    # ---- host-side packing (tiny, one-time) ----
    # Tap-major packed weights: column (s*G + j*kn + c) holds tap s of kernel j,
    # channel c; kernels without tap s keep zero columns.  Padded to 128 lanes.
    w_all = jnp.zeros((W, c_pad), jnp.float32)
    for j, (k, w) in enumerate(zip(kernel_sizes, conv_ws)):
        for s in range(k):
            col = s * G + j * kn
            w_all = w_all.at[:, col:col + kn].set(w[:, 0, s, :].astype(jnp.float32).T)
    w_all = w_all.astype(compute_dtype)

    b_all = jnp.zeros((1, c_pad), jnp.float32)
    lim = jnp.full((1, c_pad), -1, jnp.int32)       # -1 => column always invalid
    for j, (k, b) in enumerate(zip(kernel_sizes, conv_bs)):
        b_all = b_all.at[0, j * kn:(j + 1) * kn].set(b.astype(jnp.float32))
        lim = lim.at[0, j * kn:(j + 1) * kn].set(H - k)
    fcw_row = jnp.zeros((1, c_pad), jnp.float32)
    fcw_row = fcw_row.at[0, :G].set(fc_w.reshape(G).astype(jnp.float32))
    fcb = jnp.asarray(fc_b, jnp.float32).reshape(1, 1)

    # ---- batch blocking (avoid host pad when a divisor block exists) ----
    Hp = _round_up(H, 8)
    B, N_pad = _pick_batch_block(N, target=block_batch, max_block=max_block)
    grid_n = N_pad // B

    x2d = x[:, 0, :, :].astype(compute_dtype)       # bf16: halves HBM->VMEM bytes
    if (Hp != H) or (N_pad != N):
        x2d = jnp.pad(x2d, ((0, N_pad - N), (0, Hp - H), (0, 0)))
    x_flat = x2d.reshape(N_pad * Hp, W)             # (N_pad*Hp, W)

    row_sign, col_sign = _roll_signs()
    kernel = _make_cnn_kernel(tuple(kernel_sizes), kn, B, Hp, H, stride,
                              c_pad, row_sign, col_sign)

    out = pl.pallas_call(
        kernel,
        out_shape=jax.ShapeDtypeStruct((N_pad, 1), jnp.float32),
        grid_spec=pltpu.PrefetchScalarGridSpec(
            num_scalar_prefetch=0,
            grid=(grid_n,),
            in_specs=[
                pl.BlockSpec((B * Hp, W), lambda b: (b, 0)),       # x rows (bf16)
                pl.BlockSpec((W, c_pad), lambda b: (0, 0)),        # packed conv weights
                pl.BlockSpec((1, c_pad), lambda b: (0, 0)),        # packed conv biases
                pl.BlockSpec((1, c_pad), lambda b: (0, 0)),        # per-column valid limit
                pl.BlockSpec((1, c_pad), lambda b: (0, 0)),        # fc weight row
                pl.BlockSpec(memory_space=pltpu.MemorySpace.SMEM), # fc bias scalar
            ],
            out_specs=pl.BlockSpec((B, 1), lambda b: (b, 0)),
        ),
        compiler_params=pltpu.CompilerParams(
            dimension_semantics=("parallel",)),
    )(x_flat, w_all, b_all, lim, fcw_row, fcb)
    return out[:N]


def _unfold(x2d, k, stride):
    """x2d: (N, H, W) -> patches (N, H_out, k*W) matching PyTorch conv sliding window."""
    N, H, W = x2d.shape
    h_out = (H - k) // stride + 1
    rows = [x2d[:, i:i + stride * h_out:stride, :] for i in range(k)]
    patches = jnp.stack(rows, axis=2)                             # (N, H_out, k, W)
    return patches.reshape(N, h_out, k * W)


def cnn_reference(x, conv_ws, conv_bs, fc_w, fc_b, kernel_sizes, stride):
    """Pure-JAX reference of the same math (true f32 arithmetic)."""
    N, C, H, W = x.shape
    kernel_num = conv_ws[0].shape[0]
    x2d = x[:, 0, :, :]
    feats = []
    for k, w, b in zip(kernel_sizes, conv_ws, conv_bs):
        p = _unfold(x2d, k, stride)                               # (N, H_out, k*W)
        wm = w.reshape(kernel_num, k * W).T                       # (k*W, kn)
        h = jnp.einsum("ntk,kc->ntc", p, wm,
                       precision=jax.lax.Precision.HIGHEST) + b[None, None, :]
        h = jnp.maximum(h, 0.0)
        feats.append(jnp.max(h, axis=1))                          # (N, kn)
    feat = jnp.concatenate(feats, axis=1)                         # (N, num_k*kn)
    return jnp.dot(feat, fc_w, precision=jax.lax.Precision.HIGHEST) + fc_b


if __name__ == "__main__":
    # Small, deterministic configuration consistent with the module.
    kernel_num = 4
    kernel_sizes = (3, 4, 5)
    stride = 1
    N, H, W = 64, 16, 1344         # width 1344 is hard-coded by the module

    key = jax.random.PRNGKey(0)
    keys = jax.random.split(key, 2 * len(kernel_sizes) + 3)

    conv_ws = []
    conv_bs = []
    for i, k in enumerate(kernel_sizes):
        conv_ws.append(0.02 * jax.random.normal(
            keys[2 * i], (kernel_num, 1, k, W), dtype=jnp.float32))
        conv_bs.append(0.01 * jax.random.normal(
            keys[2 * i + 1], (kernel_num,), dtype=jnp.float32))
    fc_w = 0.05 * jax.random.normal(
        keys[-3], (len(kernel_sizes) * kernel_num, 1), dtype=jnp.float32)
    fc_b = 0.01 * jax.random.normal(keys[-2], (1, 1), dtype=jnp.float32)

    x = jax.random.normal(keys[-1], (N, 1, H, W), dtype=jnp.float32)

    out = cnn_forward(x, conv_ws, conv_bs, fc_w, fc_b, kernel_sizes, stride)
    out = jax.block_until_ready(out)

    # Reference on the same bf16-quantized inputs with f32 math, so the only
    # difference vs. the kernel (bf16 in, f32 accumulate) is summation order.
    xq = x.astype(jnp.bfloat16).astype(jnp.float32)
    wqs = [w.astype(jnp.bfloat16).astype(jnp.float32) for w in conv_ws]
    ref = cnn_reference(xq, wqs, conv_bs, fc_w, fc_b, kernel_sizes, stride)

    assert out.shape == (N, 1), out.shape
    assert jnp.allclose(out, ref, atol=2e-3, rtol=2e-3), (
        float(jnp.max(jnp.abs(out - ref))))

    print("KERNEL_OK")
</pallas_src>

<mosaic_0001>
module attributes {stable_mosaic.version = 11 : i64} {
  func.func @probe(%arg0: memref<8x128xf32, #tpu.memory_space<vmem>>, %arg1: memref<8x128xf32, #tpu.memory_space<vmem>>, %arg2: memref<8x128xf32, #tpu.memory_space<vmem>>) attributes {dimension_semantics = [], scalar_prefetch = 0 : i64, scratch_operands = 0 : i64, tpu.core_type = #tpu.core_type<tc>} {
    %c0 = arith.constant 0 : index
    %c0_0 = arith.constant 0 : index
    %0 = vector.load %arg0[%c0, %c0_0] : memref<8x128xf32, #tpu.memory_space<vmem>>, vector<8x128xf32>
    %c1_i32 = arith.constant 1 : i32
    %1 = tpu.dynamic_rotate %0 by %c1_i32 dim 0 : vector<8x128xf32>, i32 -> vector<8x128xf32>
    %c0_1 = arith.constant 0 : index
    %c0_2 = arith.constant 0 : index
    %2 = vector.load %arg1[%c0_1, %c0_2] : memref<8x128xf32, #tpu.memory_space<vmem>>, vector<8x128xf32>
    tpu.vector_store %arg1[%c0_1, %c0_2], %1 {strides = array<i32>} : memref<8x128xf32, #tpu.memory_space<vmem>>, vector<8x128xf32>,
    %c0_3 = arith.constant 0 : index
    %c0_4 = arith.constant 0 : index
    %3 = vector.load %arg0[%c0_3, %c0_4] : memref<8x128xf32, #tpu.memory_space<vmem>>, vector<8x128xf32>
    %c1_i32_5 = arith.constant 1 : i32
    %4 = tpu.dynamic_rotate %3 by %c1_i32_5 dim 1 : vector<8x128xf32>, i32 -> vector<8x128xf32>
    %c0_6 = arith.constant 0 : index
    %c0_7 = arith.constant 0 : index
    %5 = vector.load %arg2[%c0_6, %c0_7] : memref<8x128xf32, #tpu.memory_space<vmem>>, vector<8x128xf32>
    tpu.vector_store %arg2[%c0_6, %c0_7], %4 {strides = array<i32>} : memref<8x128xf32, #tpu.memory_space<vmem>>, vector<8x128xf32>,
    return
  }
}

</mosaic_0001>

<llo_original>
// kernel: tpu_custom_call.1
$region0: #{tpu_custom_call.1}
  #allocation0 [shape = 'u32[]', space=smem, size = 0x4, offset = 0x4, fixed_abs, tag = 'smem constant byte address 0x4 - core index']
  #allocation1 [shape = 'u32[144,128]{1,0:T(1,128)}', space=vmem, size = 0x12000, scoped, tag = 'internal scratch']
  %s0 = inlined_call_operand.hbm [shape: f32[8,128], index: 0, kind: input, shape index: {}]
  %s1 = inlined_call_operand.hbm [shape: f32[8,128], index: 1, kind: output, shape index: {0}]
  %s2 = inlined_call_operand.hbm [shape: f32[8,128], index: 2, kind: output, shape index: {1}]
  %3 = xla_tuple %s1, %s2
  %s4 = sld [smem:[#allocation0]]
  $region26: #{tpu_custom_call.1} parent=0
    _
  %s6 = ssub.s32 1, %s4
  %s7 = scalar_select 0, %s6, %s4
  $region1: #{tpu_custom_call.1} parent=0
    #allocation2 [shape = 'u8[4096]{0}', space=vmem, size = 0x1000, scoped, tag = 'input window, operand 0, single buffered']
    #allocation3 [shape = 's32[1]{0}', space=sflag, size = 0x4, scoped, tag = 'scoped memory for tpu_custom_call.1']
    #allocation4 [shape = 's32[1]{0}', space=sflag, size = 0x4, scoped, tag = 'scoped memory for tpu_custom_call.1']
    #allocation5 [shape = 'u8[4096]{0}', space=vmem, size = 0x1000, scoped, tag = 'output window, operand 0, single buffered']
    #allocation6 [shape = 'u8[4096]{0}', space=vmem, size = 0x1000, scoped, tag = 'output window, operand 1, single buffered']
    #allocation7 [shape = 's32[1]{0}', space=sflag, size = 0x4, scoped, tag = 'scoped memory for tpu_custom_call.1']
    %8 = vsyncpa [#allocation3], 0
    %9 = vsyncpa [#allocation4], 0
    %10 = vsyncpa [#allocation7], 0
    // Predicated region
    $region2: #{tpu_custom_call.1} parent=1 // pred_check
      _
    $region3: #{tpu_custom_call.1} parent=1 // pred_check_branch
      %12 = sbr.rel (0) target = $region5
    $region4: #{tpu_custom_call.1} parent=1 // pred_region
      %s14 = ssub.s32 128, 128
      %15 = vsyncadd [#allocation3], %s14
      %s17 = sshll.u32 [#allocation2], 4
      %s18 = int_to_ptr.vmem [resolvable:$true] %s17
      %20 = dma.hbm_to_vmem [thread:$0]  %s0, 128, %s18, [#allocation3]
    $region5: #{tpu_custom_call.1} parent=1 // pred_fallthru
      _
    // Predicated region
    $region6: #{tpu_custom_call.1} parent=1 // pred_check
      _
    $region7: #{tpu_custom_call.1} parent=1 // pred_check_branch
      %22 = sbr.rel (0) target = $region9
    $region8: #{tpu_custom_call.1} parent=1 // pred_region
      %23 = dma.done [#allocation3], 128
    $region9: #{tpu_custom_call.1} parent=1 // pred_fallthru
      _
    %v24 = vld [vmem:[#allocation2] sm:$0xff]
    %v25 = vrot.slane %v24, 7
    %26 = vst [vmem:[#allocation5] sm:$0xff] %v25
    %v27 = vld [vmem:[#allocation2] sm:$0xff]
    %28 = vrot.lane.b32.xlu0 %v27, 1
    %v29 = vpop.permute.xlu0 %28
    %30 = vst [vmem:[#allocation6] sm:$0xff] %v29
    // Predicated region
    $region10: #{tpu_custom_call.1} parent=1 // pred_check
      _
    $region11: #{tpu_custom_call.1} parent=1 // pred_check_branch
      %32 = sbr.rel (0) target = $region13
    $region12: #{tpu_custom_call.1} parent=1 // pred_region
      %s34 = ssub.s32 128, 128
      %35 = vsyncadd [#allocation4], %s34
      %s37 = sshll.u32 [#allocation5], 4
      %s38 = int_to_ptr.vmem [resolvable:$true] %s37
      %40 = dma.vmem_to_hbm [thread:$0]  %s38, 128, %s1, [#allocation4]
    $region13: #{tpu_custom_call.1} parent=1 // pred_fallthru
      _
    // Predicated region
    $region14: #{tpu_custom_call.1} parent=1 // pred_check
      _
    $region15: #{tpu_custom_call.1} parent=1 // pred_check_branch
      %42 = sbr.rel (0) target = $region17
    $region16: #{tpu_custom_call.1} parent=1 // pred_region
      %s44 = ssub.s32 128, 128
      %45 = vsyncadd [#allocation7], %s44
      %s47 = sshll.u32 [#allocation6], 4
      %s48 = int_to_ptr.vmem [resolvable:$true] %s47
      %50 = dma.vmem_to_hbm [thread:$0]  %s48, 128, %s2, [#allocation7]
    $region17: #{tpu_custom_call.1} parent=1 // pred_fallthru
      _
    // Predicated region
    $region18: #{tpu_custom_call.1} parent=1 // pred_check
      _
    $region19: #{tpu_custom_call.1} parent=1 // pred_check_branch
      %52 = sbr.rel (0) target = $region21
    $region20: #{tpu_custom_call.1} parent=1 // pred_region
      %53 = dma.done [#allocation4], 128
    $region21: #{tpu_custom_call.1} parent=1 // pred_fallthru
      _
    // Predicated region
    $region22: #{tpu_custom_call.1} parent=1 // pred_check
      _
    $region23: #{tpu_custom_call.1} parent=1 // pred_check_branch
      %55 = sbr.rel (0) target = $region25
    $region24: #{tpu_custom_call.1} parent=1 // pred_region
      %56 = dma.done [#allocation7], 128
    $region25: #{tpu_custom_call.1} parent=1 // pred_fallthru
      _
    %57 = vsyncpa [#allocation3], 1
    %58 = vsyncpa [#allocation4], 1
    %59 = vsyncpa [#allocation7], 1

</llo_original>
